<compile_context>
chip_gen: v6e
topology: v6e:2x2x1
jax: 0.10.0
libtpu: 0.0.40
codegen_flags: <defaults>
</compile_context>

<pallas_src>
import functools

import jax
import jax.numpy as jnp
from jax.experimental import pallas as pl
from jax.experimental.pallas import tpu as pltpu


def _round_up(x: int, m: int) -> int:
    return ((x + m - 1) // m) * m


def _mlp_kernel(x_ref, w1_ref, w2_ref, w3_ref, b_ref, o_ref):
    cdt = w1_ref.dtype
    # Cast x to the compute dtype on the VPU (no extra HBM pass in the wrapper).
    x = x_ref[...].astype(cdt)
    # Layer 1: Linear + ReLU (MXU matmul, f32 accumulation).
    h = jnp.dot(x, w1_ref[...], preferred_element_type=jnp.float32)
    h = jnp.maximum(h + b_ref[0:1, :], 0.0)
    # Layer 2: Linear + ReLU.
    h = jnp.dot(h.astype(cdt), w2_ref[...], preferred_element_type=jnp.float32)
    h = jnp.maximum(h + b_ref[1:2, :], 0.0)
    # Layer 3: Linear (no activation).
    h = jnp.dot(h.astype(cdt), w3_ref[...], preferred_element_type=jnp.float32)
    o_ref[...] = (h + b_ref[2:3, :]).astype(o_ref.dtype)


def prepare_params(params, compute_dtype=jnp.bfloat16):
    """One-time (outside jit / per-call path) packing of params.

    Weights -> compute_dtype, biases -> single (3, E) float32 array.
    """
    w1, b1, w2, b2, w3, b3 = params
    b_all = jnp.concatenate(
        [b1.reshape(1, -1), b2.reshape(1, -1), b3.reshape(1, -1)], axis=0
    ).astype(jnp.float32)
    return (w1.astype(compute_dtype),
            w2.astype(compute_dtype),
            w3.astype(compute_dtype),
            b_all)


@functools.partial(jax.jit, static_argnames=("tile_m", "out_dtype"))
def recipe_embedding_forward(x, prepared_params, *, tile_m: int = 1024,
                             out_dtype=jnp.float32):
    """x: (B, input_dim) -> (B, embedding_dim) in out_dtype.

    `prepared_params` comes from prepare_params(); its weight dtype is the
    kernel compute dtype (bf16 by default, f32 for exact reference match).
    """
    w1, w2, w3, b_all = prepared_params
    B, D_in = x.shape
    E = w1.shape[1]

    c_item = jnp.dtype(w1.dtype).itemsize
    x_item = jnp.dtype(x.dtype).itemsize
    o_item = jnp.dtype(out_dtype).itemsize

    # ---- Pick the batch tile -------------------------------------------------
    B_pad0 = _round_up(B, 16)
    tm = min(tile_m, B_pad0)
    # v7x: 2 TensorCores share the "parallel" grid axis.  On mid/large batches
    # ensure at least 2 grid steps so the second core is used; on 1-TC chips
    # the extra step overhead is negligible at this batch size.
    if B_pad0 >= 512:
        tm = min(tm, _round_up(pl.cdiv(B_pad0, 2), 16))
    # VMEM clamp: resident weights + double-buffered x/out tiles must fit under
    # v5e's 16 MiB default scoped VMEM even for large input_dim.
    weight_bytes = (D_in * E + 2 * E * E) * c_item * 2 + 3 * E * 4 * 2
    per_row_bytes = 2 * (D_in * x_item + E * o_item)  # double-buffered tiles
    budget = 14 * 1024 * 1024 - weight_bytes
    if budget > per_row_bytes * 16:
        tm = min(tm, max(16, (budget // per_row_bytes) // 16 * 16))
    tm = max(16, _round_up(tm, 16))

    grid_m = pl.cdiv(B, tm)
    B_pad = grid_m * tm
    if B_pad != B:
        # Padded rows flow through bias+ReLU (finite values) and are sliced off.
        x = jnp.pad(x, ((0, B_pad - B), (0, 0)))

    # ---- Block specs ----------------------------------------------------------
    # Weights/biases use constant index_maps -> DMA'd once, VMEM-resident; only
    # the x tile and the output tile stream across the grid.
    in_specs = [
        pl.BlockSpec((tm, D_in), lambda i: (i, 0)),   # x tile (native dtype)
        pl.BlockSpec((D_in, E), lambda i: (0, 0)),    # W1
        pl.BlockSpec((E, E), lambda i: (0, 0)),       # W2
        pl.BlockSpec((E, E), lambda i: (0, 0)),       # W3
        pl.BlockSpec((3, E), lambda i: (0, 0)),       # packed biases (f32)
    ]
    out_spec = pl.BlockSpec((tm, E), lambda i: (i, 0))  # lane-dense (E == 128)

    cost = pl.CostEstimate(
        flops=2 * B_pad * (D_in * E + 2 * E * E),
        transcendentals=0,
        bytes_accessed=(B_pad * D_in * x_item            # x (read once)
                        + (D_in * E + 2 * E * E) * c_item  # weights
                        + 3 * E * 4                        # biases
                        + B_pad * E * o_item),             # output
    )

    out = pl.pallas_call(
        _mlp_kernel,
        out_shape=jax.ShapeDtypeStruct((B_pad, E), out_dtype),
        grid_spec=pl.GridSpec(
            grid=(grid_m,),
            in_specs=in_specs,
            out_specs=out_spec,
        ),
        compiler_params=pltpu.CompilerParams(
            dimension_semantics=("parallel",),
        ),
        cost_estimate=cost,
    )(x, w1, w2, w3, b_all)

    return out if B_pad == B else out[:B]


def init_params(key, input_dim, embedding_dim=128):
    """Deterministic init mimicking PyTorch nn.Linear default (uniform +-1/sqrt(fan_in))."""
    def linear_init(k, fan_in, fan_out):
        k_w, k_b = jax.random.split(k)
        bound = 1.0 / jnp.sqrt(jnp.float32(fan_in))
        # Stored as (in, out): transpose of PyTorch's (out, in) weight.
        w = jax.random.uniform(k_w, (fan_in, fan_out), jnp.float32, -bound, bound)
        b = jax.random.uniform(k_b, (1, fan_out), jnp.float32, -bound, bound)
        return w, b

    k1, k2, k3 = jax.random.split(key, 3)
    w1, b1 = linear_init(k1, input_dim, embedding_dim)
    w2, b2 = linear_init(k2, embedding_dim, embedding_dim)
    w3, b3 = linear_init(k3, embedding_dim, embedding_dim)
    return (w1, b1, w2, b2, w3, b3)


def recipe_embedding_ref(x, params):
    """Pure-JAX f32 reference of the PyTorch forward pass."""
    w1, b1, w2, b2, w3, b3 = params
    h = jnp.maximum(x @ w1 + b1, 0.0)
    h = jnp.maximum(h @ w2 + b2, 0.0)
    return h @ w3 + b3


if __name__ == "__main__":
    key = jax.random.PRNGKey(0)
    k_x, k_p = jax.random.split(key)

    batch = 16
    input_dim = 32
    embedding_dim = 128

    x = jax.random.normal(k_x, (batch, input_dim), jnp.float32)
    params = init_params(k_p, input_dim, embedding_dim)
    ref = recipe_embedding_ref(x, params)

    # Default path: bf16 weights (cast once, outside the per-call path),
    # f32 accumulation, f32 output.
    prep_bf16 = prepare_params(params, jnp.bfloat16)
    out_bf16 = jax.block_until_ready(recipe_embedding_forward(x, prep_bf16))
    assert out_bf16.shape == (batch, embedding_dim)
    assert out_bf16.dtype == jnp.float32
    assert jnp.allclose(out_bf16, ref, atol=5e-2, rtol=5e-2), "bf16 path mismatch vs reference"

    # Full-precision path: must match the reference tightly.
    prep_f32 = prepare_params(params, jnp.float32)
    out_f32 = jax.block_until_ready(recipe_embedding_forward(x, prep_f32))
    assert jnp.allclose(out_f32, ref, atol=1e-5, rtol=1e-5), "f32 path mismatch vs reference"

    print("KERNEL_OK")
</pallas_src>

<mosaic_0001>
module attributes {stable_mosaic.version = 11 : i64} {
  func.func @_mlp_kernel(%arg0: i32, %arg1: memref<16x32xf32, #tpu.memory_space<vmem>>, %arg2: memref<32x128xbf16, #tpu.memory_space<vmem>>, %arg3: memref<128x128xbf16, #tpu.memory_space<vmem>>, %arg4: memref<128x128xbf16, #tpu.memory_space<vmem>>, %arg5: memref<3x128xf32, #tpu.memory_space<vmem>>, %arg6: memref<16x128xf32, #tpu.memory_space<vmem>>) attributes {dimension_semantics = [#tpu.dimension_semantics<parallel>], iteration_bounds = array<i64: 1>, scalar_prefetch = 0 : i64, scratch_operands = 0 : i64, tpu.core_type = #tpu.core_type<tc>, window_params = [{transform_indices = @transform_0, window_bounds = array<i64: 16, 32>}, {pipeline_mode = #tpu.pipeline_mode<synchronous>, transform_indices = @transform_1, window_bounds = array<i64: 32, 128>}, {pipeline_mode = #tpu.pipeline_mode<synchronous>, transform_indices = @transform_2, window_bounds = array<i64: 128, 128>}, {pipeline_mode = #tpu.pipeline_mode<synchronous>, transform_indices = @transform_3, window_bounds = array<i64: 128, 128>}, {pipeline_mode = #tpu.pipeline_mode<synchronous>, transform_indices = @transform_4, window_bounds = array<i64: 3, 128>}, {transform_indices = @transform_5, window_bounds = array<i64: 16, 128>}]} {
    %c0 = arith.constant 0 : index
    %c0_0 = arith.constant 0 : index
    %0 = vector.load %arg1[%c0, %c0_0] : memref<16x32xf32, #tpu.memory_space<vmem>>, vector<16x32xf32>
    %1 = arith.truncf %0 : vector<16x32xf32> to vector<16x32xbf16>
    %c0_1 = arith.constant 0 : index
    %c0_2 = arith.constant 0 : index
    %2 = vector.load %arg2[%c0_1, %c0_2] : memref<32x128xbf16, #tpu.memory_space<vmem>>, vector<32x128xbf16>
    %cst = arith.constant dense<0.000000e+00> : vector<16x128xf32>
    %3 = tpu.matmul %1, %2, %cst {dimension_numbers = #tpu.dot_dimension_numbers<[1], [0], [0], [1], [0, 0, 1, 1], [], []>} : vector<16x32xbf16>, vector<32x128xbf16>, vector<16x128xf32> -> vector<16x128xf32>
    %c0_3 = arith.constant 0 : index
    %c0_4 = arith.constant 0 : index
    %4 = vector.load %arg5[%c0_3, %c0_4] : memref<3x128xf32, #tpu.memory_space<vmem>>, vector<1x128xf32>
    %5 = vector.broadcast %4 : vector<1x128xf32> to vector<16x128xf32>
    %6 = arith.addf %3, %5 : vector<16x128xf32>
    %cst_5 = arith.constant 0.000000e+00 : f32
    %7 = vector.broadcast %cst_5 : f32 to vector<16x128xf32>
    %8 = arith.maximumf %6, %7 : vector<16x128xf32>
    %9 = arith.truncf %8 : vector<16x128xf32> to vector<16x128xbf16>
    %c0_6 = arith.constant 0 : index
    %c0_7 = arith.constant 0 : index
    %10 = vector.load %arg3[%c0_6, %c0_7] : memref<128x128xbf16, #tpu.memory_space<vmem>>, vector<128x128xbf16>
    %cst_8 = arith.constant dense<0.000000e+00> : vector<16x128xf32>
    %11 = tpu.matmul %9, %10, %cst_8 {dimension_numbers = #tpu.dot_dimension_numbers<[1], [0], [0], [1], [0, 0, 1, 1], [], []>} : vector<16x128xbf16>, vector<128x128xbf16>, vector<16x128xf32> -> vector<16x128xf32>
    %c1 = arith.constant 1 : index
    %c0_9 = arith.constant 0 : index
    %12 = vector.load %arg5[%c1, %c0_9] : memref<3x128xf32, #tpu.memory_space<vmem>>, vector<1x128xf32>
    %13 = vector.broadcast %12 : vector<1x128xf32> to vector<16x128xf32>
    %14 = arith.addf %11, %13 : vector<16x128xf32>
    %cst_10 = arith.constant 0.000000e+00 : f32
    %15 = vector.broadcast %cst_10 : f32 to vector<16x128xf32>
    %16 = arith.maximumf %14, %15 : vector<16x128xf32>
    %17 = arith.truncf %16 : vector<16x128xf32> to vector<16x128xbf16>
    %c0_11 = arith.constant 0 : index
    %c0_12 = arith.constant 0 : index
    %18 = vector.load %arg4[%c0_11, %c0_12] : memref<128x128xbf16, #tpu.memory_space<vmem>>, vector<128x128xbf16>
    %cst_13 = arith.constant dense<0.000000e+00> : vector<16x128xf32>
    %19 = tpu.matmul %17, %18, %cst_13 {dimension_numbers = #tpu.dot_dimension_numbers<[1], [0], [0], [1], [0, 0, 1, 1], [], []>} : vector<16x128xbf16>, vector<128x128xbf16>, vector<16x128xf32> -> vector<16x128xf32>
    %c2 = arith.constant 2 : index
    %c0_14 = arith.constant 0 : index
    %20 = vector.load %arg5[%c2, %c0_14] : memref<3x128xf32, #tpu.memory_space<vmem>>, vector<1x128xf32>
    %21 = vector.broadcast %20 : vector<1x128xf32> to vector<16x128xf32>
    %22 = arith.addf %19, %21 : vector<16x128xf32>
    %c0_15 = arith.constant 0 : index
    %c0_16 = arith.constant 0 : index
    %23 = vector.load %arg6[%c0_15, %c0_16] : memref<16x128xf32, #tpu.memory_space<vmem>>, vector<16x128xf32>
    tpu.vector_store %arg6[%c0_15, %c0_16], %22 {strides = array<i32>} : memref<16x128xf32, #tpu.memory_space<vmem>>, vector<16x128xf32>,
    return
  }
  func.func @transform_0(%arg0: i32) -> (i32, i32) {
    %c0_i32 = arith.constant 0 : i32
    %c0_i32_0 = arith.constant 0 : i32
    return %arg0, %c0_i32 : i32, i32
  }
  func.func @transform_1(%arg0: i32) -> (i32, i32) {
    %c0_i32 = arith.constant 0 : i32
    %c0_i32_0 = arith.constant 0 : i32
    %c0_i32_1 = arith.constant 0 : i32
    return %c0_i32, %c0_i32_0 : i32, i32
  }
  func.func @transform_2(%arg0: i32) -> (i32, i32) {
    %c0_i32 = arith.constant 0 : i32
    %c0_i32_0 = arith.constant 0 : i32
    %c0_i32_1 = arith.constant 0 : i32
    return %c0_i32, %c0_i32_0 : i32, i32
  }
  func.func @transform_3(%arg0: i32) -> (i32, i32) {
    %c0_i32 = arith.constant 0 : i32
    %c0_i32_0 = arith.constant 0 : i32
    %c0_i32_1 = arith.constant 0 : i32
    return %c0_i32, %c0_i32_0 : i32, i32
  }
  func.func @transform_4(%arg0: i32) -> (i32, i32) {
    %c0_i32 = arith.constant 0 : i32
    %c0_i32_0 = arith.constant 0 : i32
    %c0_i32_1 = arith.constant 0 : i32
    return %c0_i32, %c0_i32_0 : i32, i32
  }
  func.func @transform_5(%arg0: i32) -> (i32, i32) {
    %c0_i32 = arith.constant 0 : i32
    %c0_i32_0 = arith.constant 0 : i32
    return %arg0, %c0_i32 : i32, i32
  }
}

</mosaic_0001>

<llo_original>
// kernel: recipe_embedding_forward.1
$region0: #{recipe_embedding_forward.1}
  #allocation0 [shape = 'u32[]', space=smem, size = 0x4, offset = 0x4, fixed_abs, tag = 'smem constant byte address 0x4 - core index']
  #allocation1 [shape = 'u32[144,128]{1,0:T(1,128)}', space=vmem, size = 0x12000, scoped, tag = 'internal scratch']
  %s0 = inlined_call_operand.hbm [shape: f32[16,32], index: 0, kind: input, shape index: {}]
  %s1 = inlined_call_operand.hbm [shape: bf16[32,128], index: 1, kind: input, shape index: {}]
  %s2 = inlined_call_operand.hbm [shape: bf16[128,128], index: 2, kind: input, shape index: {}]
  %s3 = inlined_call_operand.hbm [shape: bf16[128,128], index: 3, kind: input, shape index: {}]
  %s4 = inlined_call_operand.vmem [shape: f32[3,128], index: 4, kind: input, shape index: {}]
  %s5 = inlined_call_operand.hbm [shape: f32[16,128], index: 5, kind: output, shape index: {}]
  %s6 = sld [smem:[#allocation0]]
  $region46: #{recipe_embedding_forward.1} parent=0
    _
  %s8 = ssub.s32 1, %s6
  %s9 = scalar_select 0, %s8, %s6
  $region1: #{recipe_embedding_forward.1} parent=0
    #allocation2 [shape = 'u8[8192]{0}', space=vmem, size = 0x2000, scoped, tag = 'input window, operand 0, single buffered']
    #allocation3 [shape = 's32[1]{0}', space=sflag, size = 0x4, scoped, tag = 'scoped memory for recipe_embedding_forward.1']
    #allocation4 [shape = 's32[1]{0}', space=sflag, size = 0x4, scoped, tag = 'scoped memory for recipe_embedding_forward.1']
    #allocation5 [shape = 'u8[8192]{0}', space=vmem, size = 0x2000, scoped, tag = 'input window, operand 1, single buffered']
    #allocation6 [shape = 's32[1]{0}', space=sflag, size = 0x4, scoped, tag = 'scoped memory for recipe_embedding_forward.1']
    #allocation7 [shape = 'u8[32768]{0}', space=vmem, size = 0x8000, scoped, tag = 'input window, operand 2, single buffered']
    #allocation8 [shape = 'u8[32768]{0}', space=vmem, size = 0x8000, scoped, tag = 'input window, operand 3, single buffered']
    #allocation9 [shape = 's32[1]{0}', space=sflag, size = 0x4, scoped, tag = 'scoped memory for recipe_embedding_forward.1']
    #allocation10 [shape = 'u8[8192]{0}', space=vmem, size = 0x2000, scoped, tag = 'output window, operand 0, single buffered']
    %10 = vsyncpa [#allocation3], 0
    %11 = vsyncpa [#allocation6], 0
    %12 = vsyncpa [#allocation9], 0
    %13 = vsyncpa [#allocation4], 0
    // Predicated region
    $region2: #{recipe_embedding_forward.1} parent=1 // pred_check
      _
    $region3: #{recipe_embedding_forward.1} parent=1 // pred_check_branch
      %15 = sbr.rel (0) target = $region5
    $region4: #{recipe_embedding_forward.1} parent=1 // pred_region
      %s17 = ssub.s32 256, 256
      %18 = vsyncadd [#allocation3], %s17
      %s19 = sshll.u32 [#allocation2], 4
      %s20 = int_to_ptr.vmem [resolvable:$true] %s19
      %25 = dma.hbm_to_vmem [thread:$0]  %s0, 256, %s20, [#allocation3], 128, 128, 8
    $region5: #{recipe_embedding_forward.1} parent=1 // pred_fallthru
      _
    // Predicated region
    $region6: #{recipe_embedding_forward.1} parent=1 // pred_check
      _
    $region7: #{recipe_embedding_forward.1} parent=1 // pred_check_branch
      %27 = sbr.rel (0) target = $region9
    $region8: #{recipe_embedding_forward.1} parent=1 // pred_region
      %s29 = ssub.s32 256, 256
      %30 = vsyncadd [#allocation6], %s29
      %s31 = sshll.u32 [#allocation5], 4
      %s32 = int_to_ptr.vmem [resolvable:$true] %s31
      %37 = dma.hbm_to_vmem [thread:$0]  %s1, 256, %s32, [#allocation6], 64, 64, 4
    $region9: #{recipe_embedding_forward.1} parent=1 // pred_fallthru
      _
    // Predicated region
    $region10: #{recipe_embedding_forward.1} parent=1 // pred_check
      _
    $region11: #{recipe_embedding_forward.1} parent=1 // pred_check_branch
      %39 = sbr.rel (0) target = $region13
    $region12: #{recipe_embedding_forward.1} parent=1 // pred_region
      %s41 = ssub.s32 1024, 1024
      %42 = vsyncadd [#allocation6], %s41
      %s43 = sshll.u32 [#allocation7], 4
      %s44 = int_to_ptr.vmem [resolvable:$true] %s43
      %49 = dma.hbm_to_vmem [thread:$0]  %s2, 1024, %s44, [#allocation6], 64, 64, 4
    $region13: #{recipe_embedding_forward.1} parent=1 // pred_fallthru
      _
    // Predicated region
    $region14: #{recipe_embedding_forward.1} parent=1 // pred_check
      _
    $region15: #{recipe_embedding_forward.1} parent=1 // pred_check_branch
      %51 = sbr.rel (0) target = $region17
    $region16: #{recipe_embedding_forward.1} parent=1 // pred_region
      %s53 = ssub.s32 1024, 1024
      %54 = vsyncadd [#allocation9], %s53
      %s55 = sshll.u32 [#allocation8], 4
      %s56 = int_to_ptr.vmem [resolvable:$true] %s55
      %61 = dma.hbm_to_vmem [thread:$0]  %s3, 1024, %s56, [#allocation9], 64, 64, 4
    $region17: #{recipe_embedding_forward.1} parent=1 // pred_fallthru
      _
    // Predicated region
    $region18: #{recipe_embedding_forward.1} parent=1 // pred_check
      _
    $region19: #{recipe_embedding_forward.1} parent=1 // pred_check_branch
      %63 = sbr.rel (0) target = $region21
    $region20: #{recipe_embedding_forward.1} parent=1 // pred_region
      _
    $region21: #{recipe_embedding_forward.1} parent=1 // pred_fallthru
      _
    // Predicated region
    $region22: #{recipe_embedding_forward.1} parent=1 // pred_check
      _
    $region23: #{recipe_embedding_forward.1} parent=1 // pred_check_branch
      %65 = sbr.rel (0) target = $region25
    $region24: #{recipe_embedding_forward.1} parent=1 // pred_region
      %66 = dma.done [#allocation3], 256
    $region25: #{recipe_embedding_forward.1} parent=1 // pred_fallthru
      _
    // Predicated region
    $region26: #{recipe_embedding_forward.1} parent=1 // pred_check
      _
    $region27: #{recipe_embedding_forward.1} parent=1 // pred_check_branch
      %68 = sbr.rel (0) target = $region29
    $region28: #{recipe_embedding_forward.1} parent=1 // pred_region
      %69 = dma.done [#allocation6], 256
    $region29: #{recipe_embedding_forward.1} parent=1 // pred_fallthru
      _
    // Predicated region
    $region30: #{recipe_embedding_forward.1} parent=1 // pred_check
      _
    $region31: #{recipe_embedding_forward.1} parent=1 // pred_check_branch
      %71 = sbr.rel (0) target = $region33
    $region32: #{recipe_embedding_forward.1} parent=1 // pred_region
      %72 = dma.done [#allocation6], 1024
    $region33: #{recipe_embedding_forward.1} parent=1 // pred_fallthru
      _
    // Predicated region
    $region34: #{recipe_embedding_forward.1} parent=1 // pred_check
      _
    $region35: #{recipe_embedding_forward.1} parent=1 // pred_check_branch
      %74 = sbr.rel (0) target = $region37
    $region36: #{recipe_embedding_forward.1} parent=1 // pred_region
      %75 = dma.done [#allocation9], 1024
    $region37: #{recipe_embedding_forward.1} parent=1 // pred_fallthru
      _
    %v77 = vld [vmem:[#allocation2] sm:$0xff]
    %v78 = vld [vmem:[#allocation2 + $0x8] sm:$0xff]
    %v79 = vpack.c.bf16 %v78, %v77
    %v80 = vld [vmem:[#allocation5] sm:$0xf]
    %v81 = vld [vmem:[#allocation5 + $0x4] sm:$0xf]
    %v82 = vld [vmem:[#allocation5 + $0x8] sm:$0xf]
    %v83 = vld [vmem:[#allocation5 + $0xc] sm:$0xf]
    %v84 = vld [vmem:[%s4] sm:$0x1]
    %v85 = vlaneseq
    %v86 = vshrl.u32 %v85, 7
    %v87 = vsub.s32 0, %v86
    %v88 = vrot.slane %v84, %v87
    %v93 = vunpack.c.l.b16 %v80
    %v94 = vunpack.c.l.b16 %v81
    %v95 = vunpack.c.l.b16 %v82
    %v96 = vunpack.c.l.b16 %v83
    %v97 = vpack.c.b16 %v94, %v93
    %v98 = vpack.c.b16 %v96, %v95
    %vm101 = vcmask 261120
    %v103 = vsel %vm101, %v79, 0
    %105 = vmatprep.subr.bf16.mxu0 0
    %106 = vmatpush1.bf16.msra.mxu0 0
    %107 = vmatprep.subr.bf16.mxu0 0
    %108 = vmatpush1.bf16.msra.mxu0 0
    %109 = vmatprep.subr.bf16.mxu0 0
    %110 = vmatpush1.bf16.msra.mxu0 0
    %111 = vmatprep.subr.bf16.mxu0 0
    %112 = vmatpush1.bf16.msra.mxu0 0
    %113 = vmatprep.subr.bf16.mxu0 0
    %114 = vmatpush1.bf16.msra.mxu0 0
    %115 = vmatprep.subr.bf16.mxu0 0
    %116 = vmatpush1.bf16.msra.mxu0 0
    %117 = vmatprep.subr.bf16.mxu0 0
    %118 = vmatpush1.bf16.msra.mxu0 %v98
    %119 = vmatprep.subr.bf16.mxu0 0
    %120 = vmatpush1.bf16.msra.mxu0 %v97
    %121 = vmatprep.subr.bf16.mxu0 0
    %122 = vmatpush2.bf16.msra.mxu0 0
    %123 = vmatprep.subr.bf16.mxu0 0
    %124 = vmatpush2.bf16.msra.mxu0 0
    %125 = vmatprep.subr.bf16.mxu0 0
    %126 = vmatpush2.bf16.msra.mxu0 0
    %127 = vmatprep.subr.bf16.mxu0 0
    %128 = vmatpush2.bf16.msra.mxu0 0
    %129 = vmatprep.subr.bf16.mxu0 0
    %130 = vmatpush2.bf16.msra.mxu0 0
    %131 = vmatprep.subr.bf16.mxu0 0
    %132 = vmatpush2.bf16.msra.mxu0 0
    %133 = vmatprep.subr.bf16.mxu0 0
    %134 = vmatpush2.bf16.msra.mxu0 0
    %135 = vmatprep.subr.bf16.mxu0 0
    %136 = vmatpush2.bf16.msra.mxu0 0
    %137 = vmatprep.mubr.bf16.mxu0 0
    %138 = vmatmul.mubr.bf16.gmra.mxu0 %v103
    %v139 = vpop.f32.mrf.mxu0
    %v140 = vadd.f32 %v88, %v139
    %v141 = vpop.f32.mrf.mxu0
    %v142 = vpop.f32.mrf.mxu0
    %v143 = vadd.f32 %v88, %v142
    %v144 = vpop.f32.mrf.mxu0
    %145 = vdwg.mxu0
    %v146 = vmax.f32 %v140, 0.0
    %v147 = vmax.f32 %v143, 0.0
    %v148 = vpack.c.bf16 %v147, %v146
    %v149 = vld [vmem:[#allocation7] sm:$0xf]
    %v150 = vld [vmem:[#allocation7 + $0x4] sm:$0xf]
    %v151 = vld [vmem:[#allocation7 + $0x8] sm:$0xf]
    %v152 = vld [vmem:[#allocation7 + $0xc] sm:$0xf]
    %v153 = vld [vmem:[#allocation7 + $0x10] sm:$0xf]
    %v154 = vld [vmem:[#allocation7 + $0x14] sm:$0xf]
    %v155 = vld [vmem:[#allocation7 + $0x18] sm:$0xf]
    %v156 = vld [vmem:[#allocation7 + $0x1c] sm:$0xf]
    %v157 = vld [vmem:[#allocation7 + $0x20] sm:$0xf]
    %v158 = vld [vmem:[#allocation7 + $0x24] sm:$0xf]
    %v159 = vld [vmem:[#allocation7 + $0x28] sm:$0xf]
    %v160 = vld [vmem:[#allocation7 + $0x2c] sm:$0xf]
    %v161 = vld [vmem:[#allocation7 + $0x30] sm:$0xf]
    %v162 = vld [vmem:[#allocation7 + $0x34] sm:$0xf]
    %v163 = vld [vmem:[#allocation7 + $0x38] sm:$0xf]
    %v164 = vld [vmem:[#allocation7 + $0x3c] sm:$0xf]
    %v165 = vld [vmem:[%s4 + $0x1] sm:$0x1]
    %v166 = vlaneseq
    %v167 = vshrl.u32 %v166, 7
    %v168 = vsub.s32 0, %v167
    %v169 = vrot.slane %v165, %v168
    %v186 = vunpack.c.l.b16 %v149
    %v187 = vunpack.c.l.b16 %v150
    %v188 = vunpack.c.l.b16 %v151
    %v189 = vunpack.c.l.b16 %v152
    %v190 = vunpack.c.l.b16 %v153
    %v191 = vunpack.c.l.b16 %v154
    %v192 = vunpack.c.l.b16 %v155
    %v193 = vunpack.c.l.b16 %v156
    %v194 = vunpack.c.l.b16 %v157
    %v195 = vunpack.c.l.b16 %v158
    %v196 = vunpack.c.l.b16 %v159
    %v197 = vunpack.c.l.b16 %v160
    %v198 = vunpack.c.l.b16 %v161
    %v199 = vunpack.c.l.b16 %v162
    %v200 = vunpack.c.l.b16 %v163
    %v201 = vunpack.c.l.b16 %v164
    %v202 = vpack.c.b16 %v187, %v186
    %v203 = vpack.c.b16 %v189, %v188
    %v204 = vpack.c.b16 %v191, %v190
    %v205 = vpack.c.b16 %v193, %v192
    %v206 = vpack.c.b16 %v195, %v194
    %v207 = vpack.c.b16 %v197, %v196
    %v208 = vpack.c.b16 %v199, %v198
    %v209 = vpack.c.b16 %v201, %v200
    %218 = vmatprep.subr.bf16.mxu0 0
    %219 = vmatpush1.bf16.msra.mxu0 %v209
    %220 = vmatprep.subr.bf16.mxu0 0
    %221 = vmatpush1.bf16.msra.mxu0 %v208
    %222 = vmatprep.subr.bf16.mxu0 0
    %223 = vmatpush1.bf16.msra.mxu0 %v207
    %224 = vmatprep.subr.bf16.mxu0 0
    %225 = vmatpush1.bf16.msra.mxu0 %v206
    %226 = vmatprep.subr.bf16.mxu0 0
    %227 = vmatpush1.bf16.msra.mxu0 %v205
    %228 = vmatprep.subr.bf16.mxu0 0
    %229 = vmatpush1.bf16.msra.mxu0 %v204
    %230 = vmatprep.subr.bf16.mxu0 0
    %231 = vmatpush1.bf16.msra.mxu0 %v203
    %232 = vmatprep.subr.bf16.mxu0 0
    %233 = vmatpush1.bf16.msra.mxu0 %v202
    %234 = vmatprep.subr.bf16.mxu0 0
    %235 = vmatpush2.bf16.msra.mxu0 0
    %236 = vmatprep.subr.bf16.mxu0 0
    %237 = vmatpush2.bf16.msra.mxu0 0
    %238 = vmatprep.subr.bf16.mxu0 0
    %239 = vmatpush2.bf16.msra.mxu0 0
    %240 = vmatprep.subr.bf16.mxu0 0
    %241 = vmatpush2.bf16.msra.mxu0 0
    %242 = vmatprep.subr.bf16.mxu0 0
    %243 = vmatpush2.bf16.msra.mxu0 0
    %244 = vmatprep.subr.bf16.mxu0 0
    %245 = vmatpush2.bf16.msra.mxu0 0
    %246 = vmatprep.subr.bf16.mxu0 0
    %247 = vmatpush2.bf16.msra.mxu0 0
    %248 = vmatprep.subr.bf16.mxu0 0
    %249 = vmatpush2.bf16.msra.mxu0 0
    %250 = vmatprep.mubr.bf16.mxu0 0
    %251 = vmatmul.mubr.bf16.gmra.mxu0 %v148
    %v252 = vpop.f32.mrf.mxu0
    %v253 = vadd.f32 %v169, %v252
    %v254 = vpop.f32.mrf.mxu0
    %v255 = vpop.f32.mrf.mxu0
    %v256 = vadd.f32 %v169, %v255
    %v257 = vpop.f32.mrf.mxu0
    %258 = vdwg.mxu0
    %v259 = vmax.f32 %v253, 0.0
    %v260 = vmax.f32 %v256, 0.0
    %v261 = vpack.c.bf16 %v260, %v259
    %v262 = vld [vmem:[#allocation8] sm:$0xf]
    %v263 = vld [vmem:[#allocation8 + $0x4] sm:$0xf]
    %v264 = vld [vmem:[#allocation8 + $0x8] sm:$0xf]
    %v265 = vld [vmem:[#allocation8 + $0xc] sm:$0xf]
    %v266 = vld [vmem:[#allocation8 + $0x10] sm:$0xf]
    %v267 = vld [vmem:[#allocation8 + $0x14] sm:$0xf]
    %v268 = vld [vmem:[#allocation8 + $0x18] sm:$0xf]
    %v269 = vld [vmem:[#allocation8 + $0x1c] sm:$0xf]
    %v270 = vld [vmem:[#allocation8 + $0x20] sm:$0xf]
    %v271 = vld [vmem:[#allocation8 + $0x24] sm:$0xf]
    %v272 = vld [vmem:[#allocation8 + $0x28] sm:$0xf]
    %v273 = vld [vmem:[#allocation8 + $0x2c] sm:$0xf]
    %v274 = vld [vmem:[#allocation8 + $0x30] sm:$0xf]
    %v275 = vld [vmem:[#allocation8 + $0x34] sm:$0xf]
    %v276 = vld [vmem:[#allocation8 + $0x38] sm:$0xf]
    %v277 = vld [vmem:[#allocation8 + $0x3c] sm:$0xf]
    %v278 = vld [vmem:[%s4 + $0x2] sm:$0x1]
    %v279 = vlaneseq
    %v280 = vshrl.u32 %v279, 7
    %v281 = vsub.s32 0, %v280
    %v282 = vrot.slane %v278, %v281
    %v299 = vunpack.c.l.b16 %v262
    %v300 = vunpack.c.l.b16 %v263
    %v301 = vunpack.c.l.b16 %v264
    %v302 = vunpack.c.l.b16 %v265
    %v303 = vunpack.c.l.b16 %v266
    %v304 = vunpack.c.l.b16 %v267
    %v305 = vunpack.c.l.b16 %v268
    %v306 = vunpack.c.l.b16 %v269
    %v307 = vunpack.c.l.b16 %v270
    %v308 = vunpack.c.l.b16 %v271
    %v309 = vunpack.c.l.b16 %v272
    %v310 = vunpack.c.l.b16 %v273
    %v311 = vunpack.c.l.b16 %v274
    %v312 = vunpack.c.l.b16 %v275
    %v313 = vunpack.c.l.b16 %v276
    %v314 = vunpack.c.l.b16 %v277
    %v315 = vpack.c.b16 %v300, %v299
    %v316 = vpack.c.b16 %v302, %v301
    %v317 = vpack.c.b16 %v304, %v303
    %v318 = vpack.c.b16 %v306, %v305
    %v319 = vpack.c.b16 %v308, %v307
    %v320 = vpack.c.b16 %v310, %v309
    %v321 = vpack.c.b16 %v312, %v311
    %v322 = vpack.c.b16 %v314, %v313
    %331 = vmatprep.subr.bf16.mxu0 0
    %332 = vmatpush1.bf16.msra.mxu0 %v322
    %333 = vmatprep.subr.bf16.mxu0 0
    %334 = vmatpush1.bf16.msra.mxu0 %v321
    %335 = vmatprep.subr.bf16.mxu0 0
    %336 = vmatpush1.bf16.msra.mxu0 %v320
    %337 = vmatprep.subr.bf16.mxu0 0
    %338 = vmatpush1.bf16.msra.mxu0 %v319
    %339 = vmatprep.subr.bf16.mxu0 0
    %340 = vmatpush1.bf16.msra.mxu0 %v318
    %341 = vmatprep.subr.bf16.mxu0 0
    %342 = vmatpush1.bf16.msra.mxu0 %v317
    %343 = vmatprep.subr.bf16.mxu0 0
    %344 = vmatpush1.bf16.msra.mxu0 %v316
    %345 = vmatprep.subr.bf16.mxu0 0
    %346 = vmatpush1.bf16.msra.mxu0 %v315
    %347 = vmatprep.subr.bf16.mxu0 0
    %348 = vmatpush2.bf16.msra.mxu0 0
    %349 = vmatprep.subr.bf16.mxu0 0
    %350 = vmatpush2.bf16.msra.mxu0 0
    %351 = vmatprep.subr.bf16.mxu0 0
    %352 = vmatpush2.bf16.msra.mxu0 0
    %353 = vmatprep.subr.bf16.mxu0 0
    %354 = vmatpush2.bf16.msra.mxu0 0
    %355 = vmatprep.subr.bf16.mxu0 0
    %356 = vmatpush2.bf16.msra.mxu0 0
    %357 = vmatprep.subr.bf16.mxu0 0
    %358 = vmatpush2.bf16.msra.mxu0 0
    %359 = vmatprep.subr.bf16.mxu0 0
    %360 = vmatpush2.bf16.msra.mxu0 0
    %361 = vmatprep.subr.bf16.mxu0 0
    %362 = vmatpush2.bf16.msra.mxu0 0
    %363 = vmatprep.mubr.bf16.mxu0 0
    %364 = vmatmul.mubr.bf16.gmra.mxu0 %v261
    %v365 = vpop.f32.mrf.mxu0
    %v366 = vadd.f32 %v282, %v365
    %v367 = vpop.f32.mrf.mxu0
    %v368 = vpop.f32.mrf.mxu0
    %v369 = vadd.f32 %v282, %v368
    %v370 = vpop.f32.mrf.mxu0
    %371 = vdwg.mxu0
    %372 = vst [vmem:[#allocation10] sm:$0xff] %v366
    %373 = vst [vmem:[#allocation10 + $0x8] sm:$0xff] %v369
    // Predicated region
    $region38: #{recipe_embedding_forward.1} parent=1 // pred_check
      _
    $region39: #{recipe_embedding_forward.1} parent=1 // pred_check_branch
      %375 = sbr.rel (0) target = $region41
    $region40: #{recipe_embedding_forward.1} parent=1 // pred_region
      %s377 = ssub.s32 256, 256
      %378 = vsyncadd [#allocation4], %s377
      %s379 = sshll.u32 [#allocation10], 4
      %s380 = int_to_ptr.vmem [resolvable:$true] %s379
      %385 = dma.vmem_to_hbm [thread:$0]  %s380, 256, %s5, [#allocation4], 128, 128, 8
    $region41: #{recipe_embedding_forward.1} parent=1 // pred_fallthru
      _
    // Predicated region
    $region42: #{recipe_embedding_forward.1} parent=1 // pred_check
      _
    $region43: #{recipe_embedding_forward.1} parent=1 // pred_check_branch
      %387 = sbr.rel (0) target = $region45
    $region44: #{recipe_embedding_forward.1} parent=1 // pred_region
      %388 = dma.done [#allocation4], 256
    $region45: #{recipe_embedding_forward.1} parent=1 // pred_fallthru
      _
    %389 = vsyncpa [#allocation3], 1
    %390 = vsyncpa [#allocation6], 1
    %391 = vsyncpa [#allocation9], 1
    %392 = vsyncpa [#allocation4], 1

</llo_original>
